<compile_context>
chip_gen: v6e
topology: v6e:2x2x1
jax: 0.10.0
libtpu: 0.0.40
codegen_flags: <defaults>
</compile_context>

<pallas_src>
import functools
import math

import jax
import jax.numpy as jnp
from jax.experimental import pallas as pl
from jax.experimental.pallas import tpu as pltpu


_DEFAULT_BLOCK_BYTES = 4 * 1024 * 1024    # target size of one pipeline buffer
_DEFAULT_VMEM_LIMIT = 32 * 1024 * 1024    # safe on v5e/v6e (128 MiB) and v7x (64 MiB)


def _pe_table(seq_len, d_model, dtype):
    """Sinusoidal PE table == PyTorch buffer pe[:seq_len, 0, :] (computed in f32)."""
    position = jnp.arange(seq_len, dtype=jnp.float32)[:, None]              # (S, 1)
    div_term = jnp.exp(jnp.arange(0, d_model, 2, dtype=jnp.float32)
                       * (-math.log(10000.0) / d_model))                    # (ceil(D/2),)
    ang = position * div_term                                               # (S, ceil(D/2))
    pe = jnp.zeros((seq_len, d_model), jnp.float32)
    pe = pe.at[:, 0::2].set(jnp.sin(ang))
    pe = pe.at[:, 1::2].set(jnp.cos(ang[:, : d_model // 2]))
    return pe.astype(dtype)


def _pe_add_kernel(x_ref, pe_ref, o_ref, *, reps: int):
    # x_ref / o_ref: (seq_tile, reps*D) tile of the (S, W=B*D) view.
    # pe_ref:        (seq_tile, D) tile of the PE table (same dtype as x).
    pe = pe_ref[...]
    if reps > 1:
        # Replicate the per-position PE across the merged batch lanes; lane-axis
        # copies only -- no B-fold transcendental redundancy.
        pe = jnp.tile(pe, (1, reps))
    # TODO(synk): dropout with p=0.0 is identity; nonzero-p training dropout not implemented.
    o_ref[...] = (x_ref[...] + pe).astype(o_ref.dtype)


def _round_seq_tile(seq_tile, s, multiple):
    """Clamp/round seq_tile: whole S, or a multiple of the dtype sublane packing."""
    seq_tile = int(seq_tile)
    if seq_tile >= s:
        return s
    seq_tile = max(multiple, (seq_tile // multiple) * multiple)
    return min(seq_tile, s)


def positional_embedding(x, *, seq_tile=None,
                         block_bytes=_DEFAULT_BLOCK_BYTES,
                         vmem_limit_bytes=_DEFAULT_VMEM_LIMIT,
                         donate_x=False):
    """x: (S, B, D). Returns x + sinusoidal PE[:S] broadcast over batch, in x.dtype."""
    if x.ndim != 3:
        raise ValueError(f"expected (seq, batch, d_model), got shape {x.shape}")
    S, B, D = x.shape
    W = B * D
    itemsize = jnp.dtype(x.dtype).itemsize
    sub = 8 * max(1, 4 // itemsize)   # native sublane packing: 8 f32, 16 bf16, 32 int8

    # PE "buffer" (S, D) in x.dtype: kernel adds at input width (bf16 add on v6e/v7x).
    pe = _pe_table(S, D, x.dtype)

    # Free minor-dim merge -> lane/sublane-dense 2D view (last dim is the full W).
    x2 = x.reshape(S, W)

    # Width tiling: only when a minimal-height full-width block exceeds the per-buffer
    # budget AND D is lane-aligned (keeps the split block unmasked / lane-dense).
    if B > 1 and sub * W * itemsize > block_bytes and D % 128 == 0:
        reps = max(1, block_bytes // (sub * D * itemsize))
        reps = min(reps, B)
    else:
        reps = B
    w_tile = reps * D
    num_w = pl.cdiv(B, reps)

    row_bytes = w_tile * itemsize
    if seq_tile is None:
        seq_tile = max(1, block_bytes // row_bytes)
        # Aim for >= 4 blocks on the (parallel) seq axis when S allows, so v7x's two
        # TensorCores both get work; harmless on 1-TC v5e/v6e.
        seq_tile = min(seq_tile, max(sub, pl.cdiv(S, 4)))
    seq_tile = _round_seq_tile(seq_tile, S, sub)
    grid = (pl.cdiv(S, seq_tile), num_w)   # padded tail blocks fine: op is elementwise

    kernel = functools.partial(_pe_add_kernel, reps=reps)

    out2 = pl.pallas_call(
        kernel,
        out_shape=jax.ShapeDtypeStruct((S, W), x.dtype),
        grid_spec=pltpu.PrefetchScalarGridSpec(
            num_scalar_prefetch=0,
            grid=grid,
            in_specs=[pl.BlockSpec((seq_tile, w_tile), lambda i, j: (i, j)),
                      pl.BlockSpec((seq_tile, D), lambda i, j: (i, 0))],
            out_specs=pl.BlockSpec((seq_tile, w_tile), lambda i, j: (i, j)),
        ),
        compiler_params=pltpu.CompilerParams(
            dimension_semantics=("parallel", "parallel"),
            vmem_limit_bytes=vmem_limit_bytes,
        ),
        # Alias only when the caller actually donates x; otherwise XLA would insert
        # a defensive copy of x (+~50% HBM traffic on a bandwidth-bound kernel).
        input_output_aliases={0: 0} if donate_x else {},
    )(x2, pe)
    return out2.reshape(S, B, D)


def _reference(x):
    # Pure-JAX reference mirroring the PyTorch module (f32 math).
    S, B, D = x.shape
    pe = _pe_table(S, D, jnp.float32)
    return x.astype(jnp.float32) + pe[:, None, :]


if __name__ == "__main__":
    key = jax.random.PRNGKey(0)
    S, B, D = 8, 2, 32                       # seq=8, batch=2, d_model=32
    x = jax.random.normal(key, (S, B, D), dtype=jnp.float32)

    # f32, single block.
    ref = _reference(x)
    out = jax.block_until_ready(positional_embedding(x))
    assert out.shape == (S, B, D) and out.dtype == x.dtype
    assert jnp.allclose(out, ref, atol=1e-5, rtol=1e-5), "f32 mismatch vs reference"

    # f32, multi-block pipelined path along seq (grid[0] > 1).
    S2 = 64
    x_long = jax.random.normal(jax.random.PRNGKey(1), (S2, B, D), dtype=jnp.float32)
    out_long = jax.block_until_ready(positional_embedding(x_long, seq_tile=16))
    assert jnp.allclose(out_long, _reference(x_long), atol=1e-5, rtol=1e-5), "tiled mismatch"

    # bf16 input: PE cast to bf16 once in the wrapper, add runs in bf16.
    x_bf16 = x.astype(jnp.bfloat16)
    out_bf16 = jax.block_until_ready(positional_embedding(x_bf16))
    ref_bf16 = _reference(x_bf16.astype(jnp.float32))
    assert out_bf16.dtype == jnp.bfloat16
    assert jnp.allclose(out_bf16.astype(jnp.float32), ref_bf16, atol=5e-2, rtol=5e-2), \
        "bf16 mismatch vs reference"

    # Width-tiled path (both grid axes > 1): tiny block_bytes forces the W split.
    S3, B3, D3 = 16, 8, 128
    x_wide = jax.random.normal(jax.random.PRNGKey(2), (S3, B3, D3), dtype=jnp.float32)
    out_wide = jax.block_until_ready(positional_embedding(x_wide, block_bytes=16 * 1024))
    assert jnp.allclose(out_wide, _reference(x_wide), atol=1e-5, rtol=1e-5), \
        "width-tiled mismatch vs reference"

    print("KERNEL_OK")
</pallas_src>

<mosaic_0001>
module attributes {stable_mosaic.version = 11 : i64} {
  func.func @_pe_add_kernel(%arg0: i32, %arg1: i32, %arg2: memref<8x64xf32, #tpu.memory_space<vmem>>, %arg3: memref<8x32xf32, #tpu.memory_space<vmem>>, %arg4: memref<8x64xf32, #tpu.memory_space<vmem>>) attributes {dimension_semantics = [#tpu.dimension_semantics<parallel>, #tpu.dimension_semantics<parallel>], iteration_bounds = array<i64: 1, 1>, scalar_prefetch = 0 : i64, scratch_operands = 0 : i64, tpu.core_type = #tpu.core_type<tc>, window_params = [{transform_indices = @transform_0, window_bounds = array<i64: 8, 64>}, {transform_indices = @transform_1, window_bounds = array<i64: 8, 32>}, {transform_indices = @transform_2, window_bounds = array<i64: 8, 64>}]} {
    %c0 = arith.constant 0 : index
    %c0_0 = arith.constant 0 : index
    %0 = vector.load %arg3[%c0, %c0_0] : memref<8x32xf32, #tpu.memory_space<vmem>>, vector<8x32xf32>
    %1 = tpu.concatenate %0, %0 in 1 : vector<8x32xf32>, vector<8x32xf32> -> vector<8x64xf32>
    %c0_1 = arith.constant 0 : index
    %c0_2 = arith.constant 0 : index
    %2 = vector.load %arg2[%c0_1, %c0_2] : memref<8x64xf32, #tpu.memory_space<vmem>>, vector<8x64xf32>
    %3 = arith.addf %2, %1 : vector<8x64xf32>
    %c0_3 = arith.constant 0 : index
    %c0_4 = arith.constant 0 : index
    %4 = vector.load %arg4[%c0_3, %c0_4] : memref<8x64xf32, #tpu.memory_space<vmem>>, vector<8x64xf32>
    tpu.vector_store %arg4[%c0_3, %c0_4], %3 {strides = array<i32>} : memref<8x64xf32, #tpu.memory_space<vmem>>, vector<8x64xf32>,
    return
  }
  func.func @transform_0(%arg0: i32, %arg1: i32) -> (i32, i32) {
    %c0_i32 = arith.constant 0 : i32
    return %arg0, %arg1 : i32, i32
  }
  func.func @transform_1(%arg0: i32, %arg1: i32) -> (i32, i32) {
    %c0_i32 = arith.constant 0 : i32
    %c0_i32_0 = arith.constant 0 : i32
    return %arg0, %c0_i32 : i32, i32
  }
  func.func @transform_2(%arg0: i32, %arg1: i32) -> (i32, i32) {
    %c0_i32 = arith.constant 0 : i32
    return %arg0, %arg1 : i32, i32
  }
}

</mosaic_0001>

<llo_original>
// kernel: tpu_custom_call.1
$region0: #{tpu_custom_call.1}
  #allocation0 [shape = 'u32[]', space=smem, size = 0x4, offset = 0x4, fixed_abs, tag = 'smem constant byte address 0x4 - core index']
  #allocation1 [shape = 'u32[144,128]{1,0:T(1,128)}', space=vmem, size = 0x12000, scoped, tag = 'internal scratch']
  %s0 = inlined_call_operand.hbm [shape: f32[8,64], index: 0, kind: input, shape index: {}]
  %s1 = inlined_call_operand.hbm [shape: f32[8,32], index: 1, kind: input, shape index: {}]
  %s2 = inlined_call_operand.hbm [shape: f32[8,64], index: 2, kind: output, shape index: {}]
  %s3 = sld [smem:[#allocation0]]
  $region26: #{tpu_custom_call.1} parent=0
    _
  %s5 = ssub.s32 1, %s3
  %s6 = scalar_select 0, %s5, %s3
  $region1: #{tpu_custom_call.1} parent=0
    #allocation2 [shape = 'u8[4096]{0}', space=vmem, size = 0x1000, scoped, tag = 'input window, operand 0, single buffered']
    #allocation3 [shape = 's32[1]{0}', space=sflag, size = 0x4, scoped, tag = 'scoped memory for tpu_custom_call.1']
    #allocation4 [shape = 's32[1]{0}', space=sflag, size = 0x4, scoped, tag = 'scoped memory for tpu_custom_call.1']
    #allocation5 [shape = 'u8[4096]{0}', space=vmem, size = 0x1000, scoped, tag = 'input window, operand 1, single buffered']
    #allocation6 [shape = 's32[1]{0}', space=sflag, size = 0x4, scoped, tag = 'scoped memory for tpu_custom_call.1']
    #allocation7 [shape = 'u8[4096]{0}', space=vmem, size = 0x1000, scoped, tag = 'output window, operand 0, single buffered']
    %7 = vsyncpa [#allocation3], 0
    %8 = vsyncpa [#allocation6], 0
    %9 = vsyncpa [#allocation4], 0
    // Predicated region
    $region2: #{tpu_custom_call.1} parent=1 // pred_check
      _
    $region3: #{tpu_custom_call.1} parent=1 // pred_check_branch
      %11 = sbr.rel (0) target = $region5
    $region4: #{tpu_custom_call.1} parent=1 // pred_region
      %s13 = ssub.s32 128, 128
      %14 = vsyncadd [#allocation3], %s13
      %s16 = sshll.u32 [#allocation2], 4
      %s17 = int_to_ptr.vmem [resolvable:$true] %s16
      %19 = dma.hbm_to_vmem [thread:$0]  %s0, 128, %s17, [#allocation3]
    $region5: #{tpu_custom_call.1} parent=1 // pred_fallthru
      _
    // Predicated region
    $region6: #{tpu_custom_call.1} parent=1 // pred_check
      _
    $region7: #{tpu_custom_call.1} parent=1 // pred_check_branch
      %21 = sbr.rel (0) target = $region9
    $region8: #{tpu_custom_call.1} parent=1 // pred_region
      %s23 = ssub.s32 128, 128
      %24 = vsyncadd [#allocation6], %s23
      %s26 = sshll.u32 [#allocation5], 4
      %s27 = int_to_ptr.vmem [resolvable:$true] %s26
      %29 = dma.hbm_to_vmem [thread:$0]  %s1, 128, %s27, [#allocation6]
    $region9: #{tpu_custom_call.1} parent=1 // pred_fallthru
      _
    // Predicated region
    $region10: #{tpu_custom_call.1} parent=1 // pred_check
      _
    $region11: #{tpu_custom_call.1} parent=1 // pred_check_branch
      %31 = sbr.rel (0) target = $region13
    $region12: #{tpu_custom_call.1} parent=1 // pred_region
      %32 = dma.done [#allocation3], 128
    $region13: #{tpu_custom_call.1} parent=1 // pred_fallthru
      _
    // Predicated region
    $region14: #{tpu_custom_call.1} parent=1 // pred_check
      _
    $region15: #{tpu_custom_call.1} parent=1 // pred_check_branch
      %34 = sbr.rel (0) target = $region17
    $region16: #{tpu_custom_call.1} parent=1 // pred_region
      %35 = dma.done [#allocation6], 128
    $region17: #{tpu_custom_call.1} parent=1 // pred_fallthru
      _
    %v36 = vld [vmem:[#allocation5] sm:$0xff]
    %38 = vrot.lane.b32.xlu0 %v36, 32
    %v39 = vpop.permute.xlu0 %38
    %vm41 = vcmask 261120
    %v42 = vsel %vm41, %v36, %v39
    %v43 = vld [vmem:[#allocation2] sm:$0xff]
    %v44 = vadd.f32 %v43, %v42
    %vm45 = vcmask 523264
    %46 = vst.msk [vmem:[#allocation7] sm:$0xff] %vm45, %v44
    // Predicated region
    $region18: #{tpu_custom_call.1} parent=1 // pred_check
      _
    $region19: #{tpu_custom_call.1} parent=1 // pred_check_branch
      %48 = sbr.rel (0) target = $region21
    $region20: #{tpu_custom_call.1} parent=1 // pred_region
      %s50 = ssub.s32 128, 128
      %51 = vsyncadd [#allocation4], %s50
      %s53 = sshll.u32 [#allocation7], 4
      %s54 = int_to_ptr.vmem [resolvable:$true] %s53
      %56 = dma.vmem_to_hbm [thread:$0]  %s54, 128, %s2, [#allocation4]
    $region21: #{tpu_custom_call.1} parent=1 // pred_fallthru
      _
    // Predicated region
    $region22: #{tpu_custom_call.1} parent=1 // pred_check
      _
    $region23: #{tpu_custom_call.1} parent=1 // pred_check_branch
      %58 = sbr.rel (0) target = $region25
    $region24: #{tpu_custom_call.1} parent=1 // pred_region
      %59 = dma.done [#allocation4], 128
    $region25: #{tpu_custom_call.1} parent=1 // pred_fallthru
      _
    %60 = vsyncpa [#allocation3], 1
    %61 = vsyncpa [#allocation6], 1
    %62 = vsyncpa [#allocation4], 1

</llo_original>
